<compile_context>
chip_gen: v7x
topology: tpu7x:2x2x1
jax: 0.10.0
libtpu: 0.0.40
codegen_flags: <defaults>
</compile_context>

<pallas_src>
import functools

import jax
import jax.numpy as jnp
import numpy as np
from jax.experimental import pallas as pl
from jax.experimental.pallas import tpu as pltpu

ALPHA = 0.1
EPSILON = 1e-8
_LANES = 128


def _build_kernel(T, n_tiles, tile_r, C, n_total, alpha, eps):
    tile_elems = float(tile_r * C)
    inv_tile = 1.0 / tile_elems
    inv_ntiles = 1.0 / float(n_tiles)
    inv_nm1 = 1.0 / float(n_total - 1)

    def kernel(*refs):
        rs_ref = refs[0]                      # (T, 1)  previous running_std
        loss_refs = refs[1:1 + T]             # T x (tile_r, C) loss tiles
        out_ref = refs[1 + T]                 # (tile_r, C) summed normalized loss
        new_rs_ref = refs[2 + T]              # (T, 1)  updated running_std
        m2_ref = refs[3 + T]                  # (T, 1)  sum of within-tile M2
        msum_ref = refs[4 + T]                # (T, 1)  sum of tile means
        msq_ref = refs[5 + T]                 # (T, 1)  sum of tile means^2
        scale_ref = refs[6 + T]               # (T, 1)  1 / (new_rs + eps)

        phase = pl.program_id(0)
        t = pl.program_id(1)

        @pl.when((phase == 0) & (t == 0))
        def _init():
            m2_ref[...] = jnp.zeros_like(m2_ref)
            msum_ref[...] = jnp.zeros_like(msum_ref)
            msq_ref[...] = jnp.zeros_like(msq_ref)

        @pl.when(phase == 0)
        def _stats():
            # Per-tile centered statistics (Chan/Welford merge across tiles):
            # avoids catastrophic cancellation of a naive global sum-of-squares.
            for i in range(T):
                x = loss_refs[i][...].astype(jnp.float32)                  # (tile_r, C)
                rowsum = jnp.sum(x, axis=1, keepdims=True)                 # (tile_r, 1)
                mu = jnp.sum(rowsum, axis=0, keepdims=True) * inv_tile     # (1, 1)
                d = x - jnp.broadcast_to(mu, (1, C))                       # centered tile
                m2_rows = jnp.sum(d * d, axis=1, keepdims=True)            # (tile_r, 1)
                m2 = jnp.sum(m2_rows, axis=0, keepdims=True)               # (1, 1)
                m2_ref[i:i + 1, :] = m2_ref[i:i + 1, :] + m2
                msum_ref[i:i + 1, :] = msum_ref[i:i + 1, :] + mu
                msq_ref[i:i + 1, :] = msq_ref[i:i + 1, :] + mu * mu

            @pl.when(t == n_tiles - 1)
            def _finalize():
                msum = msum_ref[...]                                       # (T, 1)
                between = tile_elems * (msq_ref[...] - msum * msum * inv_ntiles)
                m2_tot = jnp.maximum(m2_ref[...] + between, 0.0)
                std = jnp.sqrt(m2_tot * inv_nm1)                           # ddof=1
                new_rs = (1.0 - alpha) * rs_ref[...].astype(jnp.float32) + alpha * std
                new_rs_ref[...] = new_rs
                denom = new_rs + eps
                r = pl.reciprocal(denom, approx=True)                      # EUP vrcp
                scale_ref[...] = r * (2.0 - denom * r)                     # 1 Newton step

        @pl.when(phase == 1)
        def _normalize():
            s0 = jnp.broadcast_to(scale_ref[0:1, :], (1, C))
            acc = loss_refs[0][...].astype(jnp.float32) * s0
            for i in range(1, T):
                si = jnp.broadcast_to(scale_ref[i:i + 1, :], (1, C))
                acc = acc + loss_refs[i][...].astype(jnp.float32) * si
            out_ref[...] = acc.astype(out_ref.dtype)

    return kernel


def _pick_tile_rows(R, max_rows):
    if R <= max_rows:
        return R
    t = max(max_rows - (max_rows % 8), 8)
    while R % t:
        t -= 8
    return t


def normalized_loss(losses, running_std, *, max_tile_rows=1024):
    """losses: list of T same-shaped arrays; running_std: (T,) f32.

    Returns (summed normalized loss with the original per-task shape,
             updated running_std of shape (T,)).
    """
    T = len(losses)
    loss_shape = losses[0].shape
    out_dtype = losses[0].dtype
    N = int(np.prod(loss_shape)) if loss_shape else 1

    rs = running_std.reshape(T, 1).astype(jnp.float32)

    if N <= 1:
        # torch: loss.numel() <= 1  ->  std = 1.0.  Trivial scalar path, no kernel.
        new_rs = (1.0 - ALPHA) * rs + ALPHA * 1.0
        out = sum(l.astype(jnp.float32) / (new_rs[i, 0] + EPSILON) for i, l in enumerate(losses))
        return out.astype(out_dtype).reshape(loss_shape), new_rs.reshape(T)

    # TODO(synk): losses whose element count is not a multiple of 8*128 need a
    # padded + masked statistics path; not implemented here.
    C = _LANES
    assert N % (8 * C) == 0, "loss numel must be a multiple of 1024 for the TPU kernel"
    R = N // C
    tile_r = _pick_tile_rows(R, max_tile_rows)
    n_tiles = R // tile_r

    # Free reshapes only — no stacking, no extra HBM traffic.
    xs = [l.reshape(R, C) for l in losses]

    kernel = _build_kernel(T, n_tiles, tile_r, C, N, ALPHA, EPSILON)

    rs_spec = pl.BlockSpec((T, 1), lambda p, t: (0, 0))
    loss_specs = [pl.BlockSpec((tile_r, C), lambda p, t: (t, 0)) for _ in range(T)]
    # Output maps to block 0 during phase 0 (never written -> never flushed there)
    # and to block t during phase 1, so each output block is written back once.
    out_spec = pl.BlockSpec((tile_r, C), lambda p, t: (p * t, 0))
    new_rs_spec = pl.BlockSpec((T, 1), lambda p, t: (0, 0))

    out, new_rs = pl.pallas_call(
        kernel,
        out_shape=(
            jax.ShapeDtypeStruct((R, C), out_dtype),
            jax.ShapeDtypeStruct((T, 1), jnp.float32),
        ),
        grid_spec=pltpu.PrefetchScalarGridSpec(
            num_scalar_prefetch=0,
            grid=(2, n_tiles),                      # (phase, row-tile)
            in_specs=[rs_spec] + loss_specs,
            out_specs=(out_spec, new_rs_spec),
            scratch_shapes=[pltpu.VMEM((T, 1), jnp.float32)] * 4,
        ),
        compiler_params=pltpu.CompilerParams(
            # Both axes carry sequential dependencies (phase ordering + the
            # cross-tile stats reduction in phase 0).
            dimension_semantics=("arbitrary", "arbitrary"),
            vmem_limit_bytes=32 * 1024 * 1024,
        ),
    )(rs, *xs)

    return out.reshape(loss_shape), new_rs.reshape(T)


def _reference(losses, running_std):
    # NumPy float64 reference mirroring the PyTorch loop.
    rs = np.asarray(running_std, dtype=np.float64).copy()
    total = None
    for i, l in enumerate(losses):
        l = np.asarray(l, dtype=np.float64)
        std = l.std(ddof=1) if l.size > 1 else 1.0
        rs[i] = (1 - ALPHA) * rs[i] + ALPHA * std
        nl = l / (rs[i] + EPSILON)
        total = nl if total is None else total + nl
    return total, rs


if __name__ == "__main__":
    def run_case(num_tasks, loss_shape, max_tile_rows):
        keys = jax.random.split(jax.random.PRNGKey(0), num_tasks)
        losses = [
            jax.random.normal(k, loss_shape, dtype=jnp.float32) * (i + 1.0) + 0.5 * i
            for i, k in enumerate(keys)
        ]
        running_std = jnp.ones((num_tasks,), dtype=jnp.float32)   # module init state

        out, new_rs = normalized_loss(losses, running_std, max_tile_rows=max_tile_rows)
        out = jax.block_until_ready(out)
        new_rs = jax.block_until_ready(new_rs)

        ref_out, ref_rs = _reference(losses, running_std)
        assert np.allclose(np.asarray(out), ref_out, rtol=2e-4, atol=2e-4), "output mismatch"
        assert np.allclose(np.asarray(new_rs), ref_rs, rtol=1e-4, atol=1e-5), "running_std mismatch"

    # (a) small losses: one tile per task -> resident fast path (single HBM read).
    run_case(num_tasks=4, loss_shape=(8, 128), max_tile_rows=1024)
    # (b) larger losses forced through the tiled two-phase grid (4 row tiles).
    run_case(num_tasks=3, loss_shape=(64, 128), max_tile_rows=16)

    print("KERNEL_OK")
</pallas_src>

<mosaic_0001>
module attributes {stable_mosaic.version = 11 : i64} {
  func.func @kernel(%arg0: i32, %arg1: i32, %arg2: memref<4x1xf32, #tpu.memory_space<vmem>>, %arg3: memref<8x128xf32, #tpu.memory_space<vmem>>, %arg4: memref<8x128xf32, #tpu.memory_space<vmem>>, %arg5: memref<8x128xf32, #tpu.memory_space<vmem>>, %arg6: memref<8x128xf32, #tpu.memory_space<vmem>>, %arg7: memref<8x128xf32, #tpu.memory_space<vmem>>, %arg8: memref<4x1xf32, #tpu.memory_space<vmem>>, %arg9: memref<4x1xf32, #tpu.memory_space<vmem>>, %arg10: memref<4x1xf32, #tpu.memory_space<vmem>>, %arg11: memref<4x1xf32, #tpu.memory_space<vmem>>, %arg12: memref<4x1xf32, #tpu.memory_space<vmem>>) attributes {dimension_semantics = [#tpu.dimension_semantics<arbitrary>, #tpu.dimension_semantics<arbitrary>], iteration_bounds = array<i64: 2, 1>, scalar_prefetch = 0 : i64, scratch_operands = 4 : i64, tpu.core_type = #tpu.core_type<tc>, window_params = [{pipeline_mode = #tpu.pipeline_mode<synchronous>, transform_indices = @transform_0, window_bounds = array<i64: 4, 1>}, {transform_indices = @transform_1, window_bounds = array<i64: 8, 128>}, {transform_indices = @transform_2, window_bounds = array<i64: 8, 128>}, {transform_indices = @transform_3, window_bounds = array<i64: 8, 128>}, {transform_indices = @transform_4, window_bounds = array<i64: 8, 128>}, {transform_indices = @transform_5, window_bounds = array<i64: 8, 128>}, {pipeline_mode = #tpu.pipeline_mode<synchronous>, transform_indices = @transform_6, window_bounds = array<i64: 4, 1>}]} {
    %c0_i32 = arith.constant 0 : i32
    %0 = arith.cmpi eq, %arg0, %c0_i32 : i32
    %c0_i32_0 = arith.constant 0 : i32
    %1 = arith.cmpi eq, %arg1, %c0_i32_0 : i32
    %2 = arith.andi %0, %1 : i1
    %3 = arith.extui %2 : i1 to i32
    %c0_i32_1 = arith.constant 0 : i32
    %4 = arith.cmpi ne, %3, %c0_i32_1 : i32
    scf.if %4 {
      %cst = arith.constant 0.000000e+00 : f32
      %11 = vector.broadcast %cst : f32 to vector<4x1xf32>
      %c0 = arith.constant 0 : index
      %c0_5 = arith.constant 0 : index
      %12 = vector.load %arg9[%c0, %c0_5] : memref<4x1xf32, #tpu.memory_space<vmem>>, vector<4x1xf32>
      tpu.vector_store %arg9[%c0, %c0_5], %11 {strides = array<i32>} : memref<4x1xf32, #tpu.memory_space<vmem>>, vector<4x1xf32>,
      %cst_6 = arith.constant 0.000000e+00 : f32
      %13 = vector.broadcast %cst_6 : f32 to vector<4x1xf32>
      %c0_7 = arith.constant 0 : index
      %c0_8 = arith.constant 0 : index
      %14 = vector.load %arg10[%c0_7, %c0_8] : memref<4x1xf32, #tpu.memory_space<vmem>>, vector<4x1xf32>
      tpu.vector_store %arg10[%c0_7, %c0_8], %13 {strides = array<i32>} : memref<4x1xf32, #tpu.memory_space<vmem>>, vector<4x1xf32>,
      %cst_9 = arith.constant 0.000000e+00 : f32
      %15 = vector.broadcast %cst_9 : f32 to vector<4x1xf32>
      %c0_10 = arith.constant 0 : index
      %c0_11 = arith.constant 0 : index
      %16 = vector.load %arg11[%c0_10, %c0_11] : memref<4x1xf32, #tpu.memory_space<vmem>>, vector<4x1xf32>
      tpu.vector_store %arg11[%c0_10, %c0_11], %15 {strides = array<i32>} : memref<4x1xf32, #tpu.memory_space<vmem>>, vector<4x1xf32>,
    } else {
    }
    %c0_i32_2 = arith.constant 0 : i32
    %5 = arith.cmpi eq, %arg0, %c0_i32_2 : i32
    %6 = arith.extui %5 : i1 to i32
    %c0_i32_3 = arith.constant 0 : i32
    %7 = arith.cmpi ne, %6, %c0_i32_3 : i32
    scf.if %7 {
      %c0 = arith.constant 0 : index
      %c0_5 = arith.constant 0 : index
      %11 = vector.load %arg3[%c0, %c0_5] : memref<8x128xf32, #tpu.memory_space<vmem>>, vector<8x128xf32>
      %cst = arith.constant dense<0.000000e+00> : vector<8xf32>
      %12 = vector.multi_reduction <add>, %11, %cst [1] : vector<8x128xf32> to vector<8xf32>
      %13 = vector.shape_cast %12 : vector<8xf32> to vector<8x1xf32>
      %cst_6 = arith.constant dense<0.000000e+00> : vector<1xf32>
      %14 = vector.multi_reduction <add>, %13, %cst_6 [0] : vector<8x1xf32> to vector<1xf32>
      %15 = vector.shape_cast %14 : vector<1xf32> to vector<1x1xf32>
      %cst_7 = arith.constant 9.765625E-4 : f32
      %16 = vector.broadcast %cst_7 : f32 to vector<1x1xf32>
      %17 = arith.mulf %15, %16 : vector<1x1xf32>
      %18 = vector.shape_cast %17 : vector<1x1xf32> to vector<1x1xf32>
      %19 = vector.broadcast %18 : vector<1x1xf32> to vector<1x128xf32>
      %20 = vector.broadcast %19 : vector<1x128xf32> to vector<8x128xf32>
      %21 = arith.subf %11, %20 : vector<8x128xf32>
      %22 = arith.mulf %21, %21 : vector<8x128xf32>
      %cst_8 = arith.constant dense<0.000000e+00> : vector<8xf32>
      %23 = vector.multi_reduction <add>, %22, %cst_8 [1] : vector<8x128xf32> to vector<8xf32>
      %24 = vector.shape_cast %23 : vector<8xf32> to vector<8x1xf32>
      %cst_9 = arith.constant dense<0.000000e+00> : vector<1xf32>
      %25 = vector.multi_reduction <add>, %24, %cst_9 [0] : vector<8x1xf32> to vector<1xf32>
      %26 = vector.shape_cast %25 : vector<1xf32> to vector<1x1xf32>
      %c0_10 = arith.constant 0 : index
      %c0_11 = arith.constant 0 : index
      %27 = vector.load %arg9[%c0_10, %c0_11] : memref<4x1xf32, #tpu.memory_space<vmem>>, vector<1x1xf32>
      %28 = arith.addf %27, %26 : vector<1x1xf32>
      %c0_12 = arith.constant 0 : index
      %c0_13 = arith.constant 0 : index
      %29 = vector.load %arg9[%c0_12, %c0_13] : memref<4x1xf32, #tpu.memory_space<vmem>>, vector<1x1xf32>
      tpu.vector_store %arg9[%c0_12, %c0_13], %28 {strides = array<i32>} : memref<4x1xf32, #tpu.memory_space<vmem>>, vector<1x1xf32>,
      %c0_14 = arith.constant 0 : index
      %c0_15 = arith.constant 0 : index
      %30 = vector.load %arg10[%c0_14, %c0_15] : memref<4x1xf32, #tpu.memory_space<vmem>>, vector<1x1xf32>
      %31 = arith.addf %30, %17 : vector<1x1xf32>
      %c0_16 = arith.constant 0 : index
      %c0_17 = arith.constant 0 : index
      %32 = vector.load %arg10[%c0_16, %c0_17] : memref<4x1xf32, #tpu.memory_space<vmem>>, vector<1x1xf32>
      tpu.vector_store %arg10[%c0_16, %c0_17], %31 {strides = array<i32>} : memref<4x1xf32, #tpu.memory_space<vmem>>, vector<1x1xf32>,
      %c0_18 = arith.constant 0 : index
      %c0_19 = arith.constant 0 : index
      %33 = vector.load %arg11[%c0_18, %c0_19] : memref<4x1xf32, #tpu.memory_space<vmem>>, vector<1x1xf32>
      %34 = arith.mulf %17, %17 : vector<1x1xf32>
      %35 = arith.addf %33, %34 : vector<1x1xf32>
      %c0_20 = arith.constant 0 : index
      %c0_21 = arith.constant 0 : index
      %36 = vector.load %arg11[%c0_20, %c0_21] : memref<4x1xf32, #tpu.memory_space<vmem>>, vector<1x1xf32>
      tpu.vector_store %arg11[%c0_20, %c0_21], %35 {strides = array<i32>} : memref<4x1xf32, #tpu.memory_space<vmem>>, vector<1x1xf32>,
      %c0_22 = arith.constant 0 : index
      %c0_23 = arith.constant 0 : index
      %37 = vector.load %arg4[%c0_22, %c0_23] : memref<8x128xf32, #tpu.memory_space<vmem>>, vector<8x128xf32>
      %cst_24 = arith.constant dense<0.000000e+00> : vector<8xf32>
      %38 = vector.multi_reduction <add>, %37, %cst_24 [1] : vector<8x128xf32> to vector<8xf32>
      %39 = vector.shape_cast %38 : vector<8xf32> to vector<8x1xf32>
      %cst_25 = arith.constant dense<0.000000e+00> : vector<1xf32>
      %40 = vector.multi_reduction <add>, %39, %cst_25 [0] : vector<8x1xf32> to vector<1xf32>
      %41 = vector.shape_cast %40 : vector<1xf32> to vector<1x1xf32>
      %cst_26 = arith.constant 9.765625E-4 : f32
      %42 = vector.broadcast %cst_26 : f32 to vector<1x1xf32>
      %43 = arith.mulf %41, %42 : vector<1x1xf32>
      %44 = vector.shape_cast %43 : vector<1x1xf32> to vector<1x1xf32>
      %45 = vector.broadcast %44 : vector<1x1xf32> to vector<1x128xf32>
      %46 = vector.broadcast %45 : vector<1x128xf32> to vector<8x128xf32>
      %47 = arith.subf %37, %46 : vector<8x128xf32>
      %48 = arith.mulf %47, %47 : vector<8x128xf32>
      %cst_27 = arith.constant dense<0.000000e+00> : vector<8xf32>
      %49 = vector.multi_reduction <add>, %48, %cst_27 [1] : vector<8x128xf32> to vector<8xf32>
      %50 = vector.shape_cast %49 : vector<8xf32> to vector<8x1xf32>
      %cst_28 = arith.constant dense<0.000000e+00> : vector<1xf32>
      %51 = vector.multi_reduction <add>, %50, %cst_28 [0] : vector<8x1xf32> to vector<1xf32>
      %52 = vector.shape_cast %51 : vector<1xf32> to vector<1x1xf32>
      %c1 = arith.constant 1 : index
      %c0_29 = arith.constant 0 : index
      %53 = vector.load %arg9[%c1, %c0_29] : memref<4x1xf32, #tpu.memory_space<vmem>>, vector<1x1xf32>
      %54 = arith.addf %53, %52 : vector<1x1xf32>
      %c1_30 = arith.constant 1 : index
      %c0_31 = arith.constant 0 : index
      %55 = vector.load %arg9[%c1_30, %c0_31] : memref<4x1xf32, #tpu.memory_space<vmem>>, vector<1x1xf32>
      tpu.vector_store %arg9[%c1_30, %c0_31], %54 {strides = array<i32>} : memref<4x1xf32, #tpu.memory_space<vmem>>, vector<1x1xf32>,
      %c1_32 = arith.constant 1 : index
      %c0_33 = arith.constant 0 : index
      %56 = vector.load %arg10[%c1_32, %c0_33] : memref<4x1xf32, #tpu.memory_space<vmem>>, vector<1x1xf32>
      %57 = arith.addf %56, %43 : vector<1x1xf32>
      %c1_34 = arith.constant 1 : index
      %c0_35 = arith.constant 0 : index
      %58 = vector.load %arg10[%c1_34, %c0_35] : memref<4x1xf32, #tpu.memory_space<vmem>>, vector<1x1xf32>
      tpu.vector_store %arg10[%c1_34, %c0_35], %57 {strides = array<i32>} : memref<4x1xf32, #tpu.memory_space<vmem>>, vector<1x1xf32>,
      %c1_36 = arith.constant 1 : index
      %c0_37 = arith.constant 0 : index
      %59 = vector.load %arg11[%c1_36, %c0_37] : memref<4x1xf32, #tpu.memory_space<vmem>>, vector<1x1xf32>
      %60 = arith.mulf %43, %43 : vector<1x1xf32>
      %61 = arith.addf %59, %60 : vector<1x1xf32>
      %c1_38 = arith.constant 1 : index
      %c0_39 = arith.constant 0 : index
      %62 = vector.load %arg11[%c1_38, %c0_39] : memref<4x1xf32, #tpu.memory_space<vmem>>, vector<1x1xf32>
      tpu.vector_store %arg11[%c1_38, %c0_39], %61 {strides = array<i32>} : memref<4x1xf32, #tpu.memory_space<vmem>>, vector<1x1xf32>,
      %c0_40 = arith.constant 0 : index
      %c0_41 = arith.constant 0 : index
      %63 = vector.load %arg5[%c0_40, %c0_41] : memref<8x128xf32, #tpu.memory_space<vmem>>, vector<8x128xf32>
      %cst_42 = arith.constant dense<0.000000e+00> : vector<8xf32>
      %64 = vector.multi_reduction <add>, %63, %cst_42 [1] : vector<8x128xf32> to vector<8xf32>
      %65 = vector.shape_cast %64 : vector<8xf32> to vector<8x1xf32>
      %cst_43 = arith.constant dense<0.000000e+00> : vector<1xf32>
      %66 = vector.multi_reduction <add>, %65, %cst_43 [0] : vector<8x1xf32> to vector<1xf32>
      %67 = vector.shape_cast %66 : vector<1xf32> to vector<1x1xf32>
      %cst_44 = arith.constant 9.765625E-4 : f32
      %68 = vector.broadcast %cst_44 : f32 to vector<1x1xf32>
      %69 = arith.mulf %67, %68 : vector<1x1xf32>
      %70 = vector.shape_cast %69 : vector<1x1xf32> to vector<1x1xf32>
      %71 = vector.broadcast %70 : vector<1x1xf32> to vector<1x128xf32>
      %72 = vector.broadcast %71 : vector<1x128xf32> to vector<8x128xf32>
      %73 = arith.subf %63, %72 : vector<8x128xf32>
      %74 = arith.mulf %73, %73 : vector<8x128xf32>
      %cst_45 = arith.constant dense<0.000000e+00> : vector<8xf32>
      %75 = vector.multi_reduction <add>, %74, %cst_45 [1] : vector<8x128xf32> to vector<8xf32>
      %76 = vector.shape_cast %75 : vector<8xf32> to vector<8x1xf32>
      %cst_46 = arith.constant dense<0.000000e+00> : vector<1xf32>
      %77 = vector.multi_reduction <add>, %76, %cst_46 [0] : vector<8x1xf32> to vector<1xf32>
      %78 = vector.shape_cast %77 : vector<1xf32> to vector<1x1xf32>
      %c2 = arith.constant 2 : index
      %c0_47 = arith.constant 0 : index
      %79 = vector.load %arg9[%c2, %c0_47] : memref<4x1xf32, #tpu.memory_space<vmem>>, vector<1x1xf32>
      %80 = arith.addf %79, %78 : vector<1x1xf32>
      %c2_48 = arith.constant 2 : index
      %c0_49 = arith.constant 0 : index
      %81 = vector.load %arg9[%c2_48, %c0_49] : memref<4x1xf32, #tpu.memory_space<vmem>>, vector<1x1xf32>
      tpu.vector_store %arg9[%c2_48, %c0_49], %80 {strides = array<i32>} : memref<4x1xf32, #tpu.memory_space<vmem>>, vector<1x1xf32>,
      %c2_50 = arith.constant 2 : index
      %c0_51 = arith.constant 0 : index
      %82 = vector.load %arg10[%c2_50, %c0_51] : memref<4x1xf32, #tpu.memory_space<vmem>>, vector<1x1xf32>
      %83 = arith.addf %82, %69 : vector<1x1xf32>
      %c2_52 = arith.constant 2 : index
      %c0_53 = arith.constant 0 : index
      %84 = vector.load %arg10[%c2_52, %c0_53] : memref<4x1xf32, #tpu.memory_space<vmem>>, vector<1x1xf32>
      tpu.vector_store %arg10[%c2_52, %c0_53], %83 {strides = array<i32>} : memref<4x1xf32, #tpu.memory_space<vmem>>, vector<1x1xf32>,
      %c2_54 = arith.constant 2 : index
      %c0_55 = arith.constant 0 : index
      %85 = vector.load %arg11[%c2_54, %c0_55] : memref<4x1xf32, #tpu.memory_space<vmem>>, vector<1x1xf32>
      %86 = arith.mulf %69, %69 : vector<1x1xf32>
      %87 = arith.addf %85, %86 : vector<1x1xf32>
      %c2_56 = arith.constant 2 : index
      %c0_57 = arith.constant 0 : index
      %88 = vector.load %arg11[%c2_56, %c0_57] : memref<4x1xf32, #tpu.memory_space<vmem>>, vector<1x1xf32>
      tpu.vector_store %arg11[%c2_56, %c0_57], %87 {strides = array<i32>} : memref<4x1xf32, #tpu.memory_space<vmem>>, vector<1x1xf32>,
      %c0_58 = arith.constant 0 : index
      %c0_59 = arith.constant 0 : index
      %89 = vector.load %arg6[%c0_58, %c0_59] : memref<8x128xf32, #tpu.memory_space<vmem>>, vector<8x128xf32>
      %cst_60 = arith.constant dense<0.000000e+00> : vector<8xf32>
      %90 = vector.multi_reduction <add>, %89, %cst_60 [1] : vector<8x128xf32> to vector<8xf32>
      %91 = vector.shape_cast %90 : vector<8xf32> to vector<8x1xf32>
      %cst_61 = arith.constant dense<0.000000e+00> : vector<1xf32>
      %92 = vector.multi_reduction <add>, %91, %cst_61 [0] : vector<8x1xf32> to vector<1xf32>
      %93 = vector.shape_cast %92 : vector<1xf32> to vector<1x1xf32>
      %cst_62 = arith.constant 9.765625E-4 : f32
      %94 = vector.broadcast %cst_62 : f32 to vector<1x1xf32>
      %95 = arith.mulf %93, %94 : vector<1x1xf32>
      %96 = vector.shape_cast %95 : vector<1x1xf32> to vector<1x1xf32>
      %97 = vector.broadcast %96 : vector<1x1xf32> to vector<1x128xf32>
      %98 = vector.broadcast %97 : vector<1x128xf32> to vector<8x128xf32>
      %99 = arith.subf %89, %98 : vector<8x128xf32>
      %100 = arith.mulf %99, %99 : vector<8x128xf32>
      %cst_63 = arith.constant dense<0.000000e+00> : vector<8xf32>
      %101 = vector.multi_reduction <add>, %100, %cst_63 [1] : vector<8x128xf32> to vector<8xf32>
      %102 = vector.shape_cast %101 : vector<8xf32> to vector<8x1xf32>
      %cst_64 = arith.constant dense<0.000000e+00> : vector<1xf32>
      %103 = vector.multi_reduction <add>, %102, %cst_64 [0] : vector<8x1xf32> to vector<1xf32>
      %104 = vector.shape_cast %103 : vector<1xf32> to vector<1x1xf32>
      %c3 = arith.constant 3 : index
      %c0_65 = arith.constant 0 : index
      %105 = vector.load %arg9[%c3, %c0_65] : memref<4x1xf32, #tpu.memory_space<vmem>>, vector<1x1xf32>
      %106 = arith.addf %105, %104 : vector<1x1xf32>
      %c3_66 = arith.constant 3 : index
      %c0_67 = arith.constant 0 : index
      %107 = vector.load %arg9[%c3_66, %c0_67] : memref<4x1xf32, #tpu.memory_space<vmem>>, vector<1x1xf32>
      tpu.vector_store %arg9[%c3_66, %c0_67], %106 {strides = array<i32>} : memref<4x1xf32, #tpu.memory_space<vmem>>, vector<1x1xf32>,
      %c3_68 = arith.constant 3 : index
      %c0_69 = arith.constant 0 : index
      %108 = vector.load %arg10[%c3_68, %c0_69] : memref<4x1xf32, #tpu.memory_space<vmem>>, vector<1x1xf32>
      %109 = arith.addf %108, %95 : vector<1x1xf32>
      %c3_70 = arith.constant 3 : index
      %c0_71 = arith.constant 0 : index
      %110 = vector.load %arg10[%c3_70, %c0_71] : memref<4x1xf32, #tpu.memory_space<vmem>>, vector<1x1xf32>
      tpu.vector_store %arg10[%c3_70, %c0_71], %109 {strides = array<i32>} : memref<4x1xf32, #tpu.memory_space<vmem>>, vector<1x1xf32>,
      %c3_72 = arith.constant 3 : index
      %c0_73 = arith.constant 0 : index
      %111 = vector.load %arg11[%c3_72, %c0_73] : memref<4x1xf32, #tpu.memory_space<vmem>>, vector<1x1xf32>
      %112 = arith.mulf %95, %95 : vector<1x1xf32>
      %113 = arith.addf %111, %112 : vector<1x1xf32>
      %c3_74 = arith.constant 3 : index
      %c0_75 = arith.constant 0 : index
      %114 = vector.load %arg11[%c3_74, %c0_75] : memref<4x1xf32, #tpu.memory_space<vmem>>, vector<1x1xf32>
      tpu.vector_store %arg11[%c3_74, %c0_75], %113 {strides = array<i32>} : memref<4x1xf32, #tpu.memory_space<vmem>>, vector<1x1xf32>,
      %c0_i32_76 = arith.constant 0 : i32
      %115 = arith.cmpi eq, %arg1, %c0_i32_76 : i32
      %116 = arith.extui %115 : i1 to i32
      %c0_i32_77 = arith.constant 0 : i32
      %117 = arith.cmpi ne, %116, %c0_i32_77 : i32
      scf.if %117 {
        %c0_78 = arith.constant 0 : index
        %c0_79 = arith.constant 0 : index
        %118 = vector.load %arg10[%c0_78, %c0_79] : memref<4x1xf32, #tpu.memory_space<vmem>>, vector<4x1xf32>
        %c0_80 = arith.constant 0 : index
        %c0_81 = arith.constant 0 : index
        %119 = vector.load %arg11[%c0_80, %c0_81] : memref<4x1xf32, #tpu.memory_space<vmem>>, vector<4x1xf32>
        %120 = arith.mulf %118, %118 : vector<4x1xf32>
        %cst_82 = arith.constant 1.000000e+00 : f32
        %121 = vector.broadcast %cst_82 : f32 to vector<4x1xf32>
        %122 = arith.mulf %120, %121 : vector<4x1xf32>
        %123 = arith.subf %119, %122 : vector<4x1xf32>
        %cst_83 = arith.constant 1.024000e+03 : f32
        %124 = vector.broadcast %cst_83 : f32 to vector<4x1xf32>
        %125 = arith.mulf %124, %123 : vector<4x1xf32>
        %c0_84 = arith.constant 0 : index
        %c0_85 = arith.constant 0 : index
        %126 = vector.load %arg9[%c0_84, %c0_85] : memref<4x1xf32, #tpu.memory_space<vmem>>, vector<4x1xf32>
        %127 = arith.addf %126, %125 : vector<4x1xf32>
        %cst_86 = arith.constant 0.000000e+00 : f32
        %128 = vector.broadcast %cst_86 : f32 to vector<4x1xf32>
        %129 = arith.maximumf %127, %128 : vector<4x1xf32>
        %cst_87 = arith.constant 9.77517105E-4 : f32
        %130 = vector.broadcast %cst_87 : f32 to vector<4x1xf32>
        %131 = arith.mulf %129, %130 : vector<4x1xf32>
        %132 = math.sqrt %131 : vector<4x1xf32>
        %c0_88 = arith.constant 0 : index
        %c0_89 = arith.constant 0 : index
        %133 = vector.load %arg2[%c0_88, %c0_89] : memref<4x1xf32, #tpu.memory_space<vmem>>, vector<4x1xf32>
        %cst_90 = arith.constant 0.899999976 : f32
        %134 = vector.broadcast %cst_90 : f32 to vector<4x1xf32>
        %135 = arith.mulf %134, %133 : vector<4x1xf32>
        %cst_91 = arith.constant 1.000000e-01 : f32
        %136 = vector.broadcast %cst_91 : f32 to vector<4x1xf32>
        %137 = arith.mulf %136, %132 : vector<4x1xf32>
        %138 = arith.addf %135, %137 : vector<4x1xf32>
        %c0_92 = arith.constant 0 : index
        %c0_93 = arith.constant 0 : index
        %139 = vector.load %arg8[%c0_92, %c0_93] : memref<4x1xf32, #tpu.memory_space<vmem>>, vector<4x1xf32>
        tpu.vector_store %arg8[%c0_92, %c0_93], %138 {strides = array<i32>} : memref<4x1xf32, #tpu.memory_space<vmem>>, vector<4x1xf32>,
        %cst_94 = arith.constant 9.99999993E-9 : f32
        %140 = vector.broadcast %cst_94 : f32 to vector<4x1xf32>
        %141 = arith.addf %138, %140 : vector<4x1xf32>
        %142 = tpu.reciprocal %141 {approx = true} : vector<4x1xf32> -> vector<4x1xf32>
        %143 = arith.mulf %141, %142 : vector<4x1xf32>
        %cst_95 = arith.constant 2.000000e+00 : f32
        %144 = vector.broadcast %cst_95 : f32 to vector<4x1xf32>
        %145 = arith.subf %144, %143 : vector<4x1xf32>
        %146 = arith.mulf %142, %145 : vector<4x1xf32>
        %c0_96 = arith.constant 0 : index
        %c0_97 = arith.constant 0 : index
        %147 = vector.load %arg12[%c0_96, %c0_97] : memref<4x1xf32, #tpu.memory_space<vmem>>, vector<4x1xf32>
        tpu.vector_store %arg12[%c0_96, %c0_97], %146 {strides = array<i32>} : memref<4x1xf32, #tpu.memory_space<vmem>>, vector<4x1xf32>,
      } else {
      }
    } else {
    }
    %c1_i32 = arith.constant 1 : i32
    %8 = arith.cmpi eq, %arg0, %c1_i32 : i32
    %9 = arith.extui %8 : i1 to i32
    %c0_i32_4 = arith.constant 0 : i32
    %10 = arith.cmpi ne, %9, %c0_i32_4 : i32
    scf.if %10 {
      %c0 = arith.constant 0 : index
      %c0_5 = arith.constant 0 : index
      %11 = vector.load %arg12[%c0, %c0_5] : memref<4x1xf32, #tpu.memory_space<vmem>>, vector<1x1xf32>
      %12 = vector.shape_cast %11 : vector<1x1xf32> to vector<1x1xf32>
      %13 = vector.broadcast %12 : vector<1x1xf32> to vector<1x128xf32>
      %c0_6 = arith.constant 0 : index
      %c0_7 = arith.constant 0 : index
      %14 = vector.load %arg3[%c0_6, %c0_7] : memref<8x128xf32, #tpu.memory_space<vmem>>, vector<8x128xf32>
      %15 = vector.broadcast %13 : vector<1x128xf32> to vector<8x128xf32>
      %16 = arith.mulf %14, %15 : vector<8x128xf32>
      %c1 = arith.constant 1 : index
      %c0_8 = arith.constant 0 : index
      %17 = vector.load %arg12[%c1, %c0_8] : memref<4x1xf32, #tpu.memory_space<vmem>>, vector<1x1xf32>
      %18 = vector.shape_cast %17 : vector<1x1xf32> to vector<1x1xf32>
      %19 = vector.broadcast %18 : vector<1x1xf32> to vector<1x128xf32>
      %c0_9 = arith.constant 0 : index
      %c0_10 = arith.constant 0 : index
      %20 = vector.load %arg4[%c0_9, %c0_10] : memref<8x128xf32, #tpu.memory_space<vmem>>, vector<8x128xf32>
      %21 = vector.broadcast %19 : vector<1x128xf32> to vector<8x128xf32>
      %22 = arith.mulf %20, %21 : vector<8x128xf32>
      %23 = arith.addf %16, %22 : vector<8x128xf32>
      %c2 = arith.constant 2 : index
      %c0_11 = arith.constant 0 : index
      %24 = vector.load %arg12[%c2, %c0_11] : memref<4x1xf32, #tpu.memory_space<vmem>>, vector<1x1xf32>
      %25 = vector.shape_cast %24 : vector<1x1xf32> to vector<1x1xf32>
      %26 = vector.broadcast %25 : vector<1x1xf32> to vector<1x128xf32>
      %c0_12 = arith.constant 0 : index
      %c0_13 = arith.constant 0 : index
      %27 = vector.load %arg5[%c0_12, %c0_13] : memref<8x128xf32, #tpu.memory_space<vmem>>, vector<8x128xf32>
      %28 = vector.broadcast %26 : vector<1x128xf32> to vector<8x128xf32>
      %29 = arith.mulf %27, %28 : vector<8x128xf32>
      %30 = arith.addf %23, %29 : vector<8x128xf32>
      %c3 = arith.constant 3 : index
      %c0_14 = arith.constant 0 : index
      %31 = vector.load %arg12[%c3, %c0_14] : memref<4x1xf32, #tpu.memory_space<vmem>>, vector<1x1xf32>
      %32 = vector.shape_cast %31 : vector<1x1xf32> to vector<1x1xf32>
      %33 = vector.broadcast %32 : vector<1x1xf32> to vector<1x128xf32>
      %c0_15 = arith.constant 0 : index
      %c0_16 = arith.constant 0 : index
      %34 = vector.load %arg6[%c0_15, %c0_16] : memref<8x128xf32, #tpu.memory_space<vmem>>, vector<8x128xf32>
      %35 = vector.broadcast %33 : vector<1x128xf32> to vector<8x128xf32>
      %36 = arith.mulf %34, %35 : vector<8x128xf32>
      %37 = arith.addf %30, %36 : vector<8x128xf32>
      %c0_17 = arith.constant 0 : index
      %c0_18 = arith.constant 0 : index
      %38 = vector.load %arg7[%c0_17, %c0_18] : memref<8x128xf32, #tpu.memory_space<vmem>>, vector<8x128xf32>
      tpu.vector_store %arg7[%c0_17, %c0_18], %37 {strides = array<i32>} : memref<8x128xf32, #tpu.memory_space<vmem>>, vector<8x128xf32>,
    } else {
    }
    return
  }
  func.func @transform_0(%arg0: i32, %arg1: i32) -> (i32, i32) {
    %c0_i32 = arith.constant 0 : i32
    %c0_i32_0 = arith.constant 0 : i32
    %c0_i32_1 = arith.constant 0 : i32
    return %c0_i32, %c0_i32_0 : i32, i32
  }
  func.func @transform_1(%arg0: i32, %arg1: i32) -> (i32, i32) {
    %c0_i32 = arith.constant 0 : i32
    %c0_i32_0 = arith.constant 0 : i32
    return %arg1, %c0_i32 : i32, i32
  }
  func.func @transform_2(%arg0: i32, %arg1: i32) -> (i32, i32) {
    %c0_i32 = arith.constant 0 : i32
    %c0_i32_0 = arith.constant 0 : i32
    return %arg1, %c0_i32 : i32, i32
  }
  func.func @transform_3(%arg0: i32, %arg1: i32) -> (i32, i32) {
    %c0_i32 = arith.constant 0 : i32
    %c0_i32_0 = arith.constant 0 : i32
    return %arg1, %c0_i32 : i32, i32
  }
  func.func @transform_4(%arg0: i32, %arg1: i32) -> (i32, i32) {
    %c0_i32 = arith.constant 0 : i32
    %c0_i32_0 = arith.constant 0 : i32
    return %arg1, %c0_i32 : i32, i32
  }
  func.func @transform_5(%arg0: i32, %arg1: i32) -> (i32, i32) {
    %0 = arith.muli %arg0, %arg1 : i32
    %c0_i32 = arith.constant 0 : i32
    %c0_i32_0 = arith.constant 0 : i32
    return %0, %c0_i32 : i32, i32
  }
  func.func @transform_6(%arg0: i32, %arg1: i32) -> (i32, i32) {
    %c0_i32 = arith.constant 0 : i32
    %c0_i32_0 = arith.constant 0 : i32
    %c0_i32_1 = arith.constant 0 : i32
    return %c0_i32, %c0_i32_0 : i32, i32
  }
}

</mosaic_0001>

<llo_original>
// kernel: tpu_custom_call.1
$region0: #{tpu_custom_call.1}
  #allocation0 [shape = 'u32[]', space=smem, size = 0x4, offset = 0x4, fixed_abs, tag = 'smem constant byte address 0x4 - core index']
  #allocation1 [shape = 'u32[144,128]{1,0:T(1,128)}', space=vmem, size = 0x12000, scoped, tag = 'internal scratch']
  #allocation2 [shape = 'f32[4,1]{1,0:T(4,128)}', space=vmem, size = 0x800, scoped, tag = 'scratch operand']
  #allocation3 [shape = 'f32[4,1]{1,0:T(4,128)}', space=vmem, size = 0x800, scoped, tag = 'scratch operand']
  #allocation4 [shape = 'f32[4,1]{1,0:T(4,128)}', space=vmem, size = 0x800, scoped, tag = 'scratch operand']
  #allocation5 [shape = 'f32[4,1]{1,0:T(4,128)}', space=vmem, size = 0x800, scoped, tag = 'scratch operand']
  %s0 = inlined_call_operand.vmem [shape: f32[4,1], index: 0, kind: input, shape index: {}]
  %s1 = inlined_call_operand.vmem [shape: f32[8,128], index: 1, kind: input, shape index: {}]
  %s2 = inlined_call_operand.hbm [shape: f32[8,128], index: 2, kind: input, shape index: {}]
  %s3 = inlined_call_operand.vmem [shape: f32[8,128], index: 3, kind: input, shape index: {}]
  %s4 = inlined_call_operand.hbm [shape: f32[8,128], index: 4, kind: input, shape index: {}]
  %s5 = inlined_call_operand.hbm [shape: f32[8,128], index: 5, kind: output, shape index: {0}]
  %s6 = inlined_call_operand.vmem [shape: f32[4,1], index: 6, kind: output, shape index: {1}]
  %7 = xla_tuple %s5, %s6
  %s8 = sld [smem:[#allocation0]]
  $region85: #{tpu_custom_call.1} parent=0
    _
  %s10 = ssub.s32 1, %s8
  %s11 = scalar_select 0, %s10, %s8
  $region1: #{tpu_custom_call.1} parent=0
    #allocation6 [shape = 'u8[4096]{0}', space=vmem, size = 0x1000, scoped, tag = 'input window, operand 2, single buffered']
    #allocation7 [shape = 's32[2]{0}', space=sflag, size = 0x8, scoped, tag = 'scoped memory for tpu_custom_call.1']
    #allocation8 [shape = 's32[2]{0}', space=sflag, size = 0x8, scoped, tag = 'scoped memory for tpu_custom_call.1']
    #allocation9 [shape = 'u8[4096]{0}', space=vmem, size = 0x1000, scoped, tag = 'input window, operand 4, single buffered']
    #allocation10 [shape = 's32[1]{0}', space=sflag, size = 0x4, scoped, tag = 'scoped memory for tpu_custom_call.1']
    #allocation11 [shape = 'u8[8192]{0}', space=vmem, size = 0x2000, scoped, tag = 'output window, operand 0']
    %12 = vsyncpa [#allocation7], 0
    %13 = vsyncpa [#allocation10], 0
    %14 = vsyncpa [#allocation8], 0
    %s15 = scalar_lea.sflag [#allocation8], 1
    %16 = vsyncpa %s15, 0
    loop: start=0, step=1, limit=4
    $region2: #{tpu_custom_call.1} parent=1 // loop_pre_header
      _
    $region3: #{tpu_custom_call.1} parent=1 // loop_header
      %s18 = sphi 0, %s22
      %p19 = scmp.ge.s32.totalorder %s18, 4
      %s25 = sphi 0, %s37
      %s26 = sphi 0, %s33
      %s27 = sphi 0, %s25
      %s28 = sphi 0, %s26
      %s29 = sphi 0, %s27
      %s30 = sphi 0, %s28
      %s38 = sphi 0, %s38
      %s40 = sphi 0, %s38
      %s41 = sphi 0, %s40
      %s55 = sphi 0, %s41
      %s61 = sphi 0, %s63
      %s64 = sphi 0, %s61
      %s65 = sphi 0, %s64
      %s81 = sphi 0, %s65
      %s87 = sphi 0, %s89
      %s90 = sphi 0, %s87
      %s91 = sphi 0, %s90
      %s107 = sphi 0, %s91
      %s113 = sphi 0, %s115
      %s116 = sphi 0, %s113
      %s117 = sphi 0, %s116
      %s133 = sphi 0, %s117
      %s139 = sphi 0, %s141
      %s142 = sphi 0, %s139
      %s143 = sphi 0, %s142
      %s159 = sphi 0, %s143
      %s167 = sphi 0, %s169
      %s170 = sphi 0, %s167
      %s171 = sphi 0, %s170
      %s187 = sphi 0, %s171
      %s191 = sphi 0, %s191
      %s193 = sphi 0, %s191
      %s194 = sphi 0, %s193
      %s208 = sphi 0, %s194
    $region4: #{tpu_custom_call.1} parent=1 // loop_header_branch
      %21 = sbr.rel (%p19) target = $region8
    $region5: #{tpu_custom_call.1} parent=1 // loop_body
      %s23 = ssub.s32 %s18, 1
      %s24 = ssub.s32 %s18, 2
      %s31 = sadd.s32 1, %s26
      %p32 = scmp.ge.s32.totalorder %s31, 1
      %s33 = scalar_select %p32, 0, %s31
      %s34 = sadd.s32 1, %s25
      %s35 = scalar_select %p32, %s34, %s25
      %p36 = scmp.ge.s32.totalorder %s35, 2
      %s37 = scalar_select %p36, 0, %s35
      %s39 = sadd.s32 %s38, 1
      %p42 = scmp.eq.s32.totalorder %s18, 1
      %p43 = scmp.ne.s32.totalorder %s38, %s40
      %p44 = scmp.eq.s32.totalorder %s18, 0
      %p45 = por %p43, %p44
      %p46 = scmp.ne.s32.totalorder %s38, %s40
      %p47 = scmp.eq.s32.totalorder %s23, 1
      %p48 = por %p46, %p47
      %p49 = scmp.ne.s32.totalorder %s40, %s41
      %p50 = scmp.eq.s32.totalorder %s23, 0
      %p51 = por %p49, %p50
      %p52 = scmp.ne.s32.totalorder %s40, %s41
      %p53 = scmp.eq.s32.totalorder %s24, 1
      %p54 = por %p52, %p53
      %p56 = scmp.ne.s32.totalorder %s41, %s55
      %p57 = scmp.eq.s32.totalorder %s24, 0
      %p58 = por %p56, %p57
      %s59 = ssub.s32 %s26, %s33
      %p60 = scmp.eq.s32.totalorder %s59, 0
      %s62 = sadd.s32 %s61, 1
      %s63 = scalar_select %p60, %s61, %s62
      %p66 = pneg %p60
      %p67 = scmp.eq.s32.totalorder %s18, 1
      %p68 = por %p66, %p67
      %p69 = scmp.ne.s32.totalorder %s61, %s64
      %p70 = scmp.eq.s32.totalorder %s18, 0
      %p71 = por %p69, %p70
      %p72 = scmp.ne.s32.totalorder %s61, %s64
      %p73 = scmp.eq.s32.totalorder %s23, 1
      %p74 = por %p72, %p73
      %p75 = scmp.ne.s32.totalorder %s64, %s65
      %p76 = scmp.eq.s32.totalorder %s23, 0
      %p77 = por %p75, %p76
      %p78 = scmp.ne.s32.totalorder %s64, %s65
      %p79 = scmp.eq.s32.totalorder %s24, 1
      %p80 = por %p78, %p79
      %p82 = scmp.ne.s32.totalorder %s65, %s81
      %p83 = scmp.eq.s32.totalorder %s24, 0
      %p84 = por %p82, %p83
      %s85 = ssub.s32 %s26, %s33
      %p86 = scmp.eq.s32.totalorder %s85, 0
      %s88 = sadd.s32 %s87, 1
      %s89 = scalar_select %p86, %s87, %s88
      %p92 = pneg %p86
      %p93 = scmp.eq.s32.totalorder %s18, 1
      %p94 = por %p92, %p93
      %p95 = scmp.ne.s32.totalorder %s87, %s90
      %p96 = scmp.eq.s32.totalorder %s18, 0
      %p97 = por %p95, %p96
      %p98 = scmp.ne.s32.totalorder %s87, %s90
      %p99 = scmp.eq.s32.totalorder %s23, 1
      %p100 = por %p98, %p99
      %p101 = scmp.ne.s32.totalorder %s90, %s91
      %p102 = scmp.eq.s32.totalorder %s23, 0
      %p103 = por %p101, %p102
      %p104 = scmp.ne.s32.totalorder %s90, %s91
      %p105 = scmp.eq.s32.totalorder %s24, 1
      %p106 = por %p104, %p105
      %p108 = scmp.ne.s32.totalorder %s91, %s107
      %p109 = scmp.eq.s32.totalorder %s24, 0
      %p110 = por %p108, %p109
      %s111 = ssub.s32 %s26, %s33
      %p112 = scmp.eq.s32.totalorder %s111, 0
      %s114 = sadd.s32 %s113, 1
      %s115 = scalar_select %p112, %s113, %s114
      %p118 = pneg %p112
      %p119 = scmp.eq.s32.totalorder %s18, 1
      %p120 = por %p118, %p119
      %p121 = scmp.ne.s32.totalorder %s113, %s116
      %p122 = scmp.eq.s32.totalorder %s18, 0
      %p123 = por %p121, %p122
      %p124 = scmp.ne.s32.totalorder %s113, %s116
      %p125 = scmp.eq.s32.totalorder %s23, 1
      %p126 = por %p124, %p125
      %p127 = scmp.ne.s32.totalorder %s116, %s117
      %p128 = scmp.eq.s32.totalorder %s23, 0
      %p129 = por %p127, %p128
      %p130 = scmp.ne.s32.totalorder %s116, %s117
      %p131 = scmp.eq.s32.totalorder %s24, 1
      %p132 = por %p130, %p131
      %p134 = scmp.ne.s32.totalorder %s117, %s133
      %p135 = scmp.eq.s32.totalorder %s24, 0
      %p136 = por %p134, %p135
      %s137 = ssub.s32 %s26, %s33
      %p138 = scmp.eq.s32.totalorder %s137, 0
      %s140 = sadd.s32 %s139, 1
      %s141 = scalar_select %p138, %s139, %s140
      %p144 = pneg %p138
      %p145 = scmp.eq.s32.totalorder %s18, 1
      %p146 = por %p144, %p145
      %p147 = scmp.ne.s32.totalorder %s139, %s142
      %p148 = scmp.eq.s32.totalorder %s18, 0
      %p149 = por %p147, %p148
      %p150 = scmp.ne.s32.totalorder %s139, %s142
      %p151 = scmp.eq.s32.totalorder %s23, 1
      %p152 = por %p150, %p151
      %p153 = scmp.ne.s32.totalorder %s142, %s143
      %p154 = scmp.eq.s32.totalorder %s23, 0
      %p155 = por %p153, %p154
      %p156 = scmp.ne.s32.totalorder %s142, %s143
      %p157 = scmp.eq.s32.totalorder %s24, 1
      %p158 = por %p156, %p157
      %p160 = scmp.ne.s32.totalorder %s143, %s159
      %p161 = scmp.eq.s32.totalorder %s24, 0
      %p162 = por %p160, %p161
      %s163 = smul.u32 %s25, %s26
      %s164 = smul.u32 %s37, %s33
      %s165 = ssub.s32 %s163, %s164
      %p166 = scmp.eq.s32.totalorder %s165, 0
      %s168 = sadd.s32 %s167, 1
      %s169 = scalar_select %p166, %s167, %s168
      %p172 = pneg %p166
      %p173 = scmp.eq.s32.totalorder %s18, 1
      %p174 = por %p172, %p173
      %p175 = scmp.ne.s32.totalorder %s167, %s170
      %p176 = scmp.eq.s32.totalorder %s18, 0
      %p177 = por %p175, %p176
      %p178 = scmp.ne.s32.totalorder %s167, %s170
      %p179 = scmp.eq.s32.totalorder %s23, 1
      %p180 = por %p178, %p179
      %p181 = scmp.ne.s32.totalorder %s170, %s171
      %p182 = scmp.eq.s32.totalorder %s23, 0
      %p183 = por %p181, %p182
      %p184 = scmp.ne.s32.totalorder %s170, %s171
      %p185 = scmp.eq.s32.totalorder %s24, 1
      %p186 = por %p184, %p185
      %p188 = scmp.ne.s32.totalorder %s171, %s187
      %p189 = scmp.eq.s32.totalorder %s24, 0
      %p190 = por %p188, %p189
      %s192 = sadd.s32 %s191, 1
      %p195 = scmp.eq.s32.totalorder %s18, 1
      %p196 = scmp.ne.s32.totalorder %s191, %s193
      %p197 = scmp.eq.s32.totalorder %s18, 0
      %p198 = por %p196, %p197
      %p199 = scmp.ne.s32.totalorder %s191, %s193
      %p200 = scmp.eq.s32.totalorder %s23, 1
      %p201 = por %p199, %p200
      %p202 = scmp.ne.s32.totalorder %s193, %s194
      %p203 = scmp.eq.s32.totalorder %s23, 0
      %p204 = por %p202, %p203
      %p205 = scmp.ne.s32.totalorder %s193, %s194
      %p206 = scmp.eq.s32.totalorder %s24, 1
      %p207 = por %p205, %p206
      %p209 = scmp.ne.s32.totalorder %s194, %s208
      %p210 = scmp.eq.s32.totalorder %s24, 0
      %p211 = por %p209, %p210
      %p212 = scmp.le.s32.totalorder 1, %s18
      %p213 = scmp.lt.s32.totalorder %s18, 3
      %p214 = pnand %p212, %p213
      %p215 = pneg %p214
      // Predicated region
      $region9: #{tpu_custom_call.1} parent=5 // pred_check
        _
      $region10: #{tpu_custom_call.1} parent=5 // pred_check_branch
        %217 = sbr.rel (%p214) target = $region12
      $region11: #{tpu_custom_call.1} parent=5 // pred_region
        %s218 = ssub.s32 %s18, 1
        // Predicated region
        $region13: #{tpu_custom_call.1} parent=11 // pred_check
          %p219 = pneg %p51
        $region14: #{tpu_custom_call.1} parent=11 // pred_check_branch
          %221 = sbr.rel (%p219) target = $region16
        $region15: #{tpu_custom_call.1} parent=11 // pred_region
          _
        $region16: #{tpu_custom_call.1} parent=11 // pred_fallthru
          _
        // Predicated region
        $region17: #{tpu_custom_call.1} parent=11 // pred_check
          %p222 = pneg %p77
        $region18: #{tpu_custom_call.1} parent=11 // pred_check_branch
          %224 = sbr.rel (%p222) target = $region20
        $region19: #{tpu_custom_call.1} parent=11 // pred_region
          %p225 = scmp.lt.s32.totalorder %s28, 0
          %s226 = scalar_select %p225, %s28, 0
          %s227 = smul.addr %s226, 8
          %s228 = scalar_lea.vmem %s1, %s227
        $region20: #{tpu_custom_call.1} parent=11 // pred_fallthru
          _
        // Predicated region
        $region21: #{tpu_custom_call.1} parent=11 // pred_check
          %p229 = pneg %p103
        $region22: #{tpu_custom_call.1} parent=11 // pred_check_branch
          %231 = sbr.rel (%p229) target = $region24
        $region23: #{tpu_custom_call.1} parent=11 // pred_region
          %s233 = ssub.s32 128, 128
          %234 = vsyncadd [#allocation7], %s233
          %s235 = smul.addr %s28, 128
          %s236 = scalar_lea.hbm %s2, %s235
          %s238 = sshll.u32 [#allocation6], 4
          %s239 = int_to_ptr.vmem [resolvable:$true] %s238
          %241 = dma.hbm_to_vmem [thread:$0]  %s236, 128, %s239, [#allocation7]
        $region24: #{tpu_custom_call.1} parent=11 // pred_fallthru
          _
        // Predicated region
        $region25: #{tpu_custom_call.1} parent=11 // pred_check
          %p242 = pneg %p129
        $region26: #{tpu_custom_call.1} parent=11 // pred_check_branch
          %244 = sbr.rel (%p242) target = $region28
        $region27: #{tpu_custom_call.1} parent=11 // pred_region
          %p245 = scmp.lt.s32.totalorder %s28, 0
          %s246 = scalar_select %p245, %s28, 0
          %s247 = smul.addr %s246, 8
          %s248 = scalar_lea.vmem %s3, %s247
        $region28: #{tpu_custom_call.1} parent=11 // pred_fallthru
          _
        // Predicated region
        $region29: #{tpu_custom_call.1} parent=11 // pred_check
          %p249 = pneg %p155
        $region30: #{tpu_custom_call.1} parent=11 // pred_check_branch
          %251 = sbr.rel (%p249) target = $region32
        $region31: #{tpu_custom_call.1} parent=11 // pred_region
          %s253 = ssub.s32 128, 128
          %254 = vsyncadd [#allocation10], %s253
          %s255 = smul.addr %s28, 128
          %s256 = scalar_lea.hbm %s4, %s255
          %s258 = sshll.u32 [#allocation9], 4
          %s259 = int_to_ptr.vmem [resolvable:$true] %s258
          %261 = dma.hbm_to_vmem [thread:$0]  %s256, 128, %s259, [#allocation10]
        $region32: #{tpu_custom_call.1} parent=11 // pred_fallthru
          _
      $region12: #{tpu_custom_call.1} parent=5 // pred_fallthru
        _
      %p262 = scmp.lt.s32.totalorder %s18, 2
      // Predicated region
      $region33: #{tpu_custom_call.1} parent=5 // pred_check
        %p263 = pneg %p262
      $region34: #{tpu_custom_call.1} parent=5 // pred_check_branch
        %265 = sbr.rel (%p263) target = $region36
      $region35: #{tpu_custom_call.1} parent=5 // pred_region
        _
      $region36: #{tpu_custom_call.1} parent=5 // pred_fallthru
        _
      %p266 = scmp.le.s32.totalorder 1, %s18
      %p267 = scmp.lt.s32.totalorder %s18, 3
      %p268 = pnand %p266, %p267
      %p269 = pneg %p268
      // Predicated region
      $region37: #{tpu_custom_call.1} parent=5 // pred_check
        _
      $region38: #{tpu_custom_call.1} parent=5 // pred_check_branch
        %271 = sbr.rel (%p268) target = $region40
      $region39: #{tpu_custom_call.1} parent=5 // pred_region
        %s272 = ssub.s32 %s18, 1
        // Predicated region
        $region41: #{tpu_custom_call.1} parent=39 // pred_check
          %p273 = pneg %p103
        $region42: #{tpu_custom_call.1} parent=39 // pred_check_branch
          %275 = sbr.rel (%p273) target = $region44
        $region43: #{tpu_custom_call.1} parent=39 // pred_region
          %276 = dma.done [#allocation7], 128
        $region44: #{tpu_custom_call.1} parent=39 // pred_fallthru
          _
        // Predicated region
        $region45: #{tpu_custom_call.1} parent=39 // pred_check
          %p277 = pneg %p155
        $region46: #{tpu_custom_call.1} parent=39 // pred_check_branch
          %279 = sbr.rel (%p277) target = $region48
        $region47: #{tpu_custom_call.1} parent=39 // pred_region
          %280 = dma.done [#allocation10], 128
        $region48: #{tpu_custom_call.1} parent=39 // pred_fallthru
          _
        %p281 = pneg %p51
        %p282 = pneg %p48
        %p283 = scmp.lt.s32.totalorder %s28, 0
        %s284 = scalar_select %p283, %s28, 0
        %s285 = smul.addr %s284, 8
        %s286 = scalar_lea.vmem %s1, %s285
        %p287 = pneg %p77
        %p288 = pneg %p74
        %p289 = pneg %p103
        %p290 = pneg %p100
        %p291 = scmp.lt.s32.totalorder %s28, 0
        %s292 = scalar_select %p291, %s28, 0
        %s293 = smul.addr %s292, 8
        %s294 = scalar_lea.vmem %s3, %s293
        %p295 = pneg %p129
        %p296 = pneg %p126
        %p297 = pneg %p155
        %p298 = pneg %p152
        %p299 = pneg %p183
        %p300 = pneg %p180
        %s301 = sand.u32 %s170, 1
        %s302 = scalar_lea.sflag [#allocation8], %s301
        %s303 = sand.u32 %s170, 1
        %s304 = smul.addr %s303, 8
        %s305 = scalar_lea.vmem [#allocation11], %s304
        %p306 = pneg %p204
        %p307 = pneg %p201
        %p308 = scmp.lt.s32.totalorder %s28, 0
        %s309 = scalar_select %p308, %s28, 0
        %s310 = smul.addr %s309, 8
        %s311 = scalar_lea.vmem %s1, %s310
        %p312 = scmp.lt.s32.totalorder %s28, 0
        %s313 = scalar_select %p312, %s28, 0
        %s314 = smul.addr %s313, 8
        %s315 = scalar_lea.vmem %s3, %s314
        %s316 = smul.u32 %s27, %s28
        %p317 = scmp.eq.s32.totalorder %s27, 0
        %p318 = scmp.eq.s32.totalorder %s28, 0
        %p319 = pnand %p317, %p318
        %p320 = pneg %p319
        // Predicated region
        $region49: #{tpu_custom_call.1} parent=39 // pred_check
          _
        $region50: #{tpu_custom_call.1} parent=39 // pred_check_branch
          %322 = sbr.rel (%p319) target = $region52
        $region51: #{tpu_custom_call.1} parent=39 // pred_region
          %vm323 = vcmask 3072
          %324 = vst.msk [vmem:[#allocation2] sm:$0xf] %vm323, 0.0
          %325 = vst.msk [vmem:[#allocation3] sm:$0xf] %vm323, 0.0
          %326 = vst.msk [vmem:[#allocation4] sm:$0xf] %vm323, 0.0
        $region52: #{tpu_custom_call.1} parent=39 // pred_fallthru
          _
        // Predicated region
        $region53: #{tpu_custom_call.1} parent=39 // pred_check
          %p327 = pneg %p317
        $region54: #{tpu_custom_call.1} parent=39 // pred_check_branch
          %329 = sbr.rel (%p327) target = $region56
        $region55: #{tpu_custom_call.1} parent=39 // pred_region
          %v330 = vld [vmem:[%s311] sm:$0xff]
          %331 = vadd.xlane.f32.xlu0 %v330
          %v332 = vpop.xlane.xlu0 %331
          %v333 = vrot.slane %v332, 4
          %v334 = vadd.f32 %v332, %v333
          %v335 = vrot.slane %v334, 2
          %v336 = vadd.f32 %v334, %v335
          %v337 = vrot.slane %v336, 1
          %v338 = vadd.f32 %v336, %v337
          %v339 = vmul.f32 %v338, 0.0009765625
          %v340 = vsub.f32 %v330, %v339
          %v341 = vmul.f32 %v340, %v340
          %342 = vadd.xlane.f32.xlu0 %v341
          %v343 = vpop.xlane.xlu0 %342
          %v344 = vrot.slane %v343, 4
          %v345 = vadd.f32 %v343, %v344
          %v346 = vrot.slane %v345, 2
          %v347 = vadd.f32 %v345, %v346
          %v348 = vrot.slane %v347, 1
          %v349 = vadd.f32 %v347, %v348
          %v350 = vld [vmem:[#allocation2] sm:$0x1]
          %v351 = vadd.f32 %v350, %v349
          %vm352 = vcmask 0
          %353 = vst.msk [vmem:[#allocation2] sm:$0x1] %vm352, %v351
          %v354 = vld [vmem:[#allocation3] sm:$0x1]
          %v355 = vadd.f32 %v354, %v339
          %356 = vst.msk [vmem:[#allocation3] sm:$0x1] %vm352, %v355
          %v357 = vld [vmem:[#allocation4] sm:$0x1]
          %v358 = vmul.f32 %v339, %v339
          %v359 = vadd.f32 %v357, %v358
          %360 = vst.msk [vmem:[#allocation4] sm:$0x1] %vm352, %v359
          %v361 = vld [vmem:[#allocation6] sm:$0xff]
          %362 = vadd.xlane.f32.xlu0 %v361
          %v363 = vpop.xlane.xlu0 %362
          %v364 = vrot.slane %v363, 4
          %v365 = vadd.f32 %v363, %v364
          %v366 = vrot.slane %v365, 2
          %v367 = vadd.f32 %v365, %v366
          %v368 = vrot.slane %v367, 1
          %v369 = vadd.f32 %v367, %v368
          %v370 = vmul.f32 %v369, 0.0009765625
          %v371 = vsub.f32 %v361, %v370
          %v372 = vmul.f32 %v371, %v371
          %373 = vadd.xlane.f32.xlu0 %v372
          %v374 = vpop.xlane.xlu0 %373
          %v375 = vrot.slane %v374, 4
          %v376 = vadd.f32 %v374, %v375
          %v377 = vrot.slane %v376, 2
          %v378 = vadd.f32 %v376, %v377
          %v379 = vrot.slane %v378, 1
          %v380 = vadd.f32 %v378, %v379
          %v381 = vld [vmem:[#allocation2 + $0x1] sm:$0x1]
          %v382 = vadd.f32 %v381, %v380
          %383 = vst.msk [vmem:[#allocation2 + $0x1] sm:$0x1] %vm352, %v382
          %v384 = vld [vmem:[#allocation3 + $0x1] sm:$0x1]
          %v385 = vadd.f32 %v384, %v370
          %386 = vst.msk [vmem:[#allocation3 + $0x1] sm:$0x1] %vm352, %v385
          %v387 = vld [vmem:[#allocation4 + $0x1] sm:$0x1]
          %v388 = vmul.f32 %v370, %v370
          %v389 = vadd.f32 %v387, %v388
          %390 = vst.msk [vmem:[#allocation4 + $0x1] sm:$0x1] %vm352, %v389
          %v391 = vld [vmem:[%s315] sm:$0xff]
          %392 = vadd.xlane.f32.xlu0 %v391
          %v393 = vpop.xlane.xlu0 %392
          %v394 = vrot.slane %v393, 4
          %v395 = vadd.f32 %v393, %v394
          %v396 = vrot.slane %v395, 2
          %v397 = vadd.f32 %v395, %v396
          %v398 = vrot.slane %v397, 1
          %v399 = vadd.f32 %v397, %v398
          %v400 = vmul.f32 %v399, 0.0009765625
          %v401 = vsub.f32 %v391, %v400
          %v402 = vmul.f32 %v401, %v401
          %403 = vadd.xlane.f32.xlu0 %v402
          %v404 = vpop.xlane.xlu0 %403
          %v405 = vrot.slane %v404, 4
          %v406 = vadd.f32 %v404, %v405
          %v407 = vrot.slane %v406, 2
          %v408 = vadd.f32 %v406, %v407
          %v409 = vrot.slane %v408, 1
          %v410 = vadd.f32 %v408, %v409
          %v411 = vld [vmem:[#allocation2 + $0x2] sm:$0x1]
          %v412 = vadd.f32 %v411, %v410
          %413 = vst.msk [vmem:[#allocation2 + $0x2] sm:$0x1] %vm352, %v412
          %v414 = vld [vmem:[#allocation3 + $0x2] sm:$0x1]
          %v415 = vadd.f32 %v414, %v400
          %416 = vst.msk [vmem:[#allocation3 + $0x2] sm:$0x1] %vm352, %v415
          %v417 = vld [vmem:[#allocation4 + $0x2] sm:$0x1]
          %v418 = vmul.f32 %v400, %v400
          %v419 = vadd.f32 %v417, %v418
          %420 = vst.msk [vmem:[#allocation4 + $0x2] sm:$0x1] %vm352, %v419
          %v421 = vld [vmem:[#allocation9] sm:$0xff]
          %422 = vadd.xlane.f32.xlu0 %v421
          %v423 = vpop.xlane.xlu0 %422
          %v424 = vrot.slane %v423, 4
          %v425 = vadd.f32 %v423, %v424
          %v426 = vrot.slane %v425, 2
          %v427 = vadd.f32 %v425, %v426
          %v428 = vrot.slane %v427, 1
          %v429 = vadd.f32 %v427, %v428
          %v430 = vmul.f32 %v429, 0.0009765625
          %v431 = vsub.f32 %v421, %v430
          %v432 = vmul.f32 %v431, %v431
          %433 = vadd.xlane.f32.xlu0 %v432
          %v434 = vpop.xlane.xlu0 %433
          %v435 = vrot.slane %v434, 4
          %v436 = vadd.f32 %v434, %v435
          %v437 = vrot.slane %v436, 2
          %v438 = vadd.f32 %v436, %v437
          %v439 = vrot.slane %v438, 1
          %v440 = vadd.f32 %v438, %v439
          %v441 = vld [vmem:[#allocation2 + $0x3] sm:$0x1]
          %v442 = vadd.f32 %v441, %v440
          %443 = vst.msk [vmem:[#allocation2 + $0x3] sm:$0x1] %vm352, %v442
          %v444 = vld [vmem:[#allocation3 + $0x3] sm:$0x1]
          %v445 = vadd.f32 %v444, %v430
          %446 = vst.msk [vmem:[#allocation3 + $0x3] sm:$0x1] %vm352, %v445
          %v447 = vld [vmem:[#allocation4 + $0x3] sm:$0x1]
          %v448 = vmul.f32 %v430, %v430
          %v449 = vadd.f32 %v447, %v448
          %450 = vst.msk [vmem:[#allocation4 + $0x3] sm:$0x1] %vm352, %v449
          // Predicated region
          $region57: #{tpu_custom_call.1} parent=55 // pred_check
            %p451 = pneg %p318
          $region58: #{tpu_custom_call.1} parent=55 // pred_check_branch
            %453 = sbr.rel (%p451) target = $region60
          $region59: #{tpu_custom_call.1} parent=55 // pred_region
            %v454 = vld [vmem:[#allocation3] sm:$0xf]
            %v455 = vld [vmem:[#allocation4] sm:$0xf]
            %v456 = vmul.f32 %v454, %v454
            %v457 = vsub.f32 %v455, %v456
            %v458 = vmul.f32 %v457, 1024.0
            %v459 = vld [vmem:[#allocation2] sm:$0xf]
            %v460 = vadd.f32 %v459, %v458
            %v461 = vmax.f32 %v460, 0.0
            %v462 = vmul.f32 %v461, 0.0009775171
            %v463 = vrsqrt.pop %v462
            %v464 = vmul.f32 %v462, %v463
            %vm465 = vcmp.eq.f32.partialorder %v462, inf
            %v466 = vsel %vm465, %v462, %v464
            %vm467 = vcmp.eq.f32.partialorder %v462, 0.0
            %v468 = vand.u32 %v462, 2147483648
            %v469 = vsel %vm467, %v468, %v466
            %v470 = vld [vmem:[%s0] sm:$0xf]
            %v471 = vmul.f32 %v470, 0.9
            %v472 = vmul.f32 %v469, 0.1
            %v473 = vadd.f32 %v471, %v472
            %vm474 = vcmask 3072
            %475 = vst.msk [vmem:[%s6] sm:$0xf] %vm474, %v473
            %v476 = vadd.f32 %v473, 1e-08
            %v477 = vrcp.pop %v476
            %v478 = vmul.f32 %v476, %v477
            %v479 = vsub.f32 2.0, %v478
            %v480 = vmul.f32 %v477, %v479
            %481 = vst.msk [vmem:[#allocation5] sm:$0xf] %vm474, %v480
          $region60: #{tpu_custom_call.1} parent=55 // pred_fallthru
            _
        $region56: #{tpu_custom_call.1} parent=39 // pred_fallthru
          _
        %p482 = scmp.eq.s32.totalorder %s27, 1
        // Predicated region
        $region61: #{tpu_custom_call.1} parent=39 // pred_check
          %p483 = pneg %p482
        $region62: #{tpu_custom_call.1} parent=39 // pred_check_branch
          %485 = sbr.rel (%p483) target = $region64
        $region63: #{tpu_custom_call.1} parent=39 // pred_region
          %v486 = vld [vmem:[#allocation5] sm:$0x1]
          %v487 = vld [vmem:[%s311] sm:$0xff]
          %s489 = vtos %v486
          %v490 = vstv %s489
          %v492 = vmul.f32 %v487, %v490
          %v493 = vld [vmem:[#allocation5 + $0x1] sm:$0x1]
          %v494 = vld [vmem:[#allocation6] sm:$0xff]
          %s496 = vtos %v493
          %v497 = vstv %s496
          %v499 = vmul.f32 %v494, %v497
          %v500 = vadd.f32 %v492, %v499
          %v501 = vld [vmem:[#allocation5 + $0x2] sm:$0x1]
          %v502 = vld [vmem:[%s315] sm:$0xff]
          %s504 = vtos %v501
          %v505 = vstv %s504
          %v507 = vmul.f32 %v502, %v505
          %v508 = vadd.f32 %v500, %v507
          %v509 = vld [vmem:[#allocation5 + $0x3] sm:$0x1]
          %v510 = vld [vmem:[#allocation9] sm:$0xff]
          %s512 = vtos %v509
          %v513 = vstv %s512
          %v515 = vmul.f32 %v510, %v513
          %v516 = vadd.f32 %v508, %v515
          %517 = vst [vmem:[%s305] sm:$0xff] %v516
        $region64: #{tpu_custom_call.1} parent=39 // pred_fallthru
          _
        %s518 = sand.u32 %s170, 1
        %s519 = scalar_lea.sflag [#allocation8], %s518
        %s520 = sand.u32 %s170, 1
        %s521 = smul.addr %s520, 8
        %s522 = scalar_lea.vmem [#allocation11], %s521
        // Predicated region
        $region65: #{tpu_custom_call.1} parent=39 // pred_check
          %p523 = pneg %p180
        $region66: #{tpu_custom_call.1} parent=39 // pred_check_branch
          %525 = sbr.rel (%p523) target = $region68
        $region67: #{tpu_custom_call.1} parent=39 // pred_region
          %s526 = smul.u32 %s27, %s28
          %s528 = ssub.s32 128, 128
          %529 = vsyncadd %s519, %s528
          %s530 = smul.addr %s526, 128
          %s531 = scalar_lea.hbm %s5, %s530
          %s533 = sshll.u32 %s522, 4
          %s534 = int_to_ptr.vmem [resolvable:$true] %s533
          %536 = dma.vmem_to_hbm [thread:$0]  %s534, 128, %s531, %s519
        $region68: #{tpu_custom_call.1} parent=39 // pred_fallthru
          _
        // Predicated region
        $region69: #{tpu_custom_call.1} parent=39 // pred_check
          %p537 = pneg %p201
        $region70: #{tpu_custom_call.1} parent=39 // pred_check_branch
          %539 = sbr.rel (%p537) target = $region72
        $region71: #{tpu_custom_call.1} parent=39 // pred_region
          _
        $region72: #{tpu_custom_call.1} parent=39 // pred_fallthru
          _
        // Predicated region
        $region73: #{tpu_custom_call.1} parent=39 // pred_check
          %p540 = pneg %p201
        $region74: #{tpu_custom_call.1} parent=39 // pred_check_branch
          %542 = sbr.rel (%p540) target = $region76
        $region75: #{tpu_custom_call.1} parent=39 // pred_region
          _
        $region76: #{tpu_custom_call.1} parent=39 // pred_fallthru
          _
      $region40: #{tpu_custom_call.1} parent=5 // pred_fallthru
        _
      %p543 = scmp.le.s32.totalorder 2, %s18
      // Predicated region
      $region77: #{tpu_custom_call.1} parent=5 // pred_check
        %p544 = pneg %p543
      $region78: #{tpu_custom_call.1} parent=5 // pred_check_branch
        %546 = sbr.rel (%p544) target = $region80
      $region79: #{tpu_custom_call.1} parent=5 // pred_region
        %s547 = ssub.s32 %s18, 2
        // Predicated region
        $region81: #{tpu_custom_call.1} parent=79 // pred_check
          %p548 = pneg %p186
        $region82: #{tpu_custom_call.1} parent=79 // pred_check_branch
          %550 = sbr.rel (%p548) target = $region84
        $region83: #{tpu_custom_call.1} parent=79 // pred_region
          %s551 = sand.u32 %s171, 1
          %s552 = scalar_lea.sflag [#allocation8], %s551
          %s553 = sand.u32 %s171, 1
          %s554 = smul.addr %s553, 8
          %s555 = scalar_lea.vmem [#allocation11], %s554
          %556 = dma.done %s552, 128
        $region84: #{tpu_custom_call.1} parent=79 // pred_fallthru
          _
      $region80: #{tpu_custom_call.1} parent=5 // pred_fallthru
        _
    $region6: #{tpu_custom_call.1} parent=1 // loop_footer
      %s22 = sadd.s32 1, %s18
    $region7: #{tpu_custom_call.1} parent=1 // loop_footer_branch
      %17 = sbr.rel target = $region3
    $region8: #{tpu_custom_call.1} parent=1 // loop_exit
      _
    %557 = vsyncpa [#allocation7], 1
    %s558 = scalar_lea.sflag [#allocation7], 1
    %559 = vsyncpa %s558, 1
    %560 = vsyncpa [#allocation10], 1
    %561 = vsyncpa [#allocation8], 1
    %s562 = scalar_lea.sflag [#allocation8], 1
    %563 = vsyncpa %s562, 1

</llo_original>
